<compile_context>
chip_gen: v5e
topology: v5e:2x2
jax: 0.10.0
libtpu: 0.0.40
codegen_flags: <defaults>
</compile_context>

<pallas_src>
import jax
import jax.numpy as jnp
from jax.experimental import pallas as pl
from jax.experimental.pallas import tpu as pltpu


def _round_up(v, m):
    return ((v + m - 1) // m) * m


def _default_vmem_limit_bytes():
    # ~3/4 of physical VMEM (v5e/v6e: 128 MiB -> 96 MiB, v7x: 64 MiB -> 48 MiB).
    try:
        cap = pltpu.get_tpu_info().vmem_capacity_bytes
        return int(min(cap * 3 // 4, 96 << 20))
    except Exception:
        return 48 << 20


# ----------------------------------------------------------------------------
# Fast path: whole problem fits in one VMEM tile (the real Linear(4,4) case).
# ----------------------------------------------------------------------------
def _ffn_small_kernel(x_ref, w_ref, b_ref, o_ref):
    # x_ref: (B, F_in), w_ref: (F_out, F_in) native layout, b_ref: (1, F_out)
    y = jax.lax.dot_general(
        x_ref[...], w_ref[...],
        dimension_numbers=(((1,), (1,)), ((), ())),   # contract F_in on F_in
        preferred_element_type=jnp.float32,
    )
    y = y + b_ref[...].astype(jnp.float32)
    o_ref[...] = jnp.maximum(y, 0.0).astype(o_ref.dtype)


def _feedforward_small(x, weight, bias):
    B, F_in = x.shape
    F_out = weight.shape[0]
    vmem = pl.BlockSpec(memory_space=pltpu.MemorySpace.VMEM)  # whole array in VMEM
    return pl.pallas_call(
        _ffn_small_kernel,
        out_shape=jax.ShapeDtypeStruct((B, F_out), x.dtype),
        in_specs=[vmem, vmem, vmem],
        out_specs=vmem,
        cost_estimate=pl.CostEstimate(
            flops=2 * B * F_in * F_out,
            transcendentals=0,
            bytes_accessed=(x.size + weight.size + bias.size + B * F_out) * 4,
        ),
    )(x, weight, bias.reshape(1, F_out))


# ----------------------------------------------------------------------------
# Tiled path: (M, N, K) grid, f32 VMEM accumulator, K innermost ("arbitrary").
# ----------------------------------------------------------------------------
def _ffn_tiled_kernel(x_ref, w_ref, b_ref, o_ref, acc_ref):
    # x_ref: (tm, tk), w_ref: (tn, tk) [native (F_out, F_in) layout], b_ref: (1, tn)
    k = pl.program_id(2)

    @pl.when(k == 0)
    def _():
        acc_ref[...] = jnp.zeros_like(acc_ref)

    # k-on-k contraction -> (tm, tn); no transpose of the weight anywhere.
    acc_ref[...] += jax.lax.dot_general(
        x_ref[...], w_ref[...],
        dimension_numbers=(((1,), (1,)), ((), ())),
        preferred_element_type=jnp.float32,
    )

    @pl.when(k == pl.num_programs(2) - 1)
    def _():
        y = acc_ref[...] + b_ref[...].astype(jnp.float32)
        o_ref[...] = jnp.maximum(y, 0.0).astype(o_ref.dtype)


def make_feedforward(weight, bias, *, weights_bf16=False,
                     tm_max=512, tn_max=512, tk_max=1024,
                     vmem_limit_bytes=None):
    """Prep weight/bias ONCE; return a jitted fn(x) = ReLU(x @ weight.T + bias)."""
    F_out, F_in = weight.shape
    sub = 16 if weights_bf16 else 8          # bf16 minimum sublane tile is 16

    tn = min(tn_max, _round_up(F_out, 128))
    tk = min(tk_max, _round_up(F_in, 128))
    N = _round_up(F_out, tn)
    K = _round_up(F_in, tk)

    # One-time parameter prep (native (F_out, F_in) layout kept: no transpose).
    w_p = weight
    if weights_bf16:
        w_p = w_p.astype(jnp.bfloat16)
    if (N, K) != (F_out, F_in):
        w_p = jnp.pad(w_p, ((0, N - F_out), (0, K - F_in)))
    b_p = (bias if N == F_out else jnp.pad(bias, (0, N - F_out))).reshape(1, N)

    if vmem_limit_bytes is None:
        vmem_limit_bytes = _default_vmem_limit_bytes()
    elt = 2 if weights_bf16 else 4

    @jax.jit
    def fn(x):
        B = x.shape[0]
        tm = min(tm_max, _round_up(B, sub))
        M = _round_up(B, tm)

        x_c = x.astype(jnp.bfloat16) if weights_bf16 else x
        x_p = x_c if (M == B and K == F_in) else jnp.pad(
            x_c, ((0, M - B), (0, K - F_in)))

        grid = (M // tm, N // tn, K // tk)   # keep M//tm * N//tn >= 2 for megacore
        cost = pl.CostEstimate(
            flops=2 * M * N * K,
            transcendentals=0,
            bytes_accessed=(M * K * elt) * grid[1]        # x re-read per N block
                          + (N * K * elt) * grid[0]       # W re-read per M block
                          + N * 4 + M * N * 4,            # bias + output
        )

        out_padded = pl.pallas_call(
            _ffn_tiled_kernel,
            out_shape=jax.ShapeDtypeStruct((M, N), jnp.float32),
            grid=grid,
            in_specs=[
                pl.BlockSpec((tm, tk), lambda i, j, k: (i, k)),   # x tile
                pl.BlockSpec((tn, tk), lambda i, j, k: (j, k)),   # W tile (native layout)
                pl.BlockSpec((1, tn), lambda i, j, k: (0, j)),    # bias tile
            ],
            out_specs=pl.BlockSpec((tm, tn), lambda i, j, k: (i, j)),
            scratch_shapes=[pltpu.VMEM((tm, tn), jnp.float32)],
            compiler_params=pltpu.CompilerParams(
                dimension_semantics=("parallel", "parallel", "arbitrary"),
                vmem_limit_bytes=vmem_limit_bytes,
            ),
            cost_estimate=cost,
        )(x_p, w_p, b_p)

        return out_padded[:B, :F_out]

    return fn


def feedforward(x, weight, bias, **kwargs):
    """ReLU(x @ weight.T + bias).  Dispatches tiny shapes to the fast path."""
    B, F_in = x.shape
    F_out = weight.shape[0]
    if B <= 256 and F_in <= 512 and F_out <= 512:
        return _feedforward_small(x, weight, bias)
    return make_feedforward(weight, bias, **kwargs)(x)


if __name__ == "__main__":
    key = jax.random.PRNGKey(0)
    k_x, k_w, k_b, k_x2, k_w2, k_b2 = jax.random.split(key, 6)

    # --- The module's actual shape: Linear(4, 4) + ReLU, small batch (fast path).
    B, F_in, F_out = 8, 4, 4
    bound = 1.0 / (F_in ** 0.5)   # mimic PyTorch Linear init range
    weight = jax.random.uniform(k_w, (F_out, F_in), jnp.float32, -bound, bound)
    bias = jax.random.uniform(k_b, (F_out,), jnp.float32, -bound, bound)
    x = jax.random.normal(k_x, (B, F_in), jnp.float32)

    out = jax.block_until_ready(feedforward(x, weight, bias))
    ref = jnp.maximum(x @ weight.T + bias, 0.0)
    assert out.shape == (B, F_out)
    assert jnp.allclose(out, ref, atol=1e-5, rtol=1e-5), "fast-path mismatch"

    # --- Tiled-path smoke test: larger linear exercising the (M,N,K) grid,
    #     accumulator init/epilogue, and the prepped-weight closure.
    B2, F_in2, F_out2 = 512, 1024, 512
    w2 = jax.random.normal(k_w2, (F_out2, F_in2), jnp.float32) * 0.02
    b2 = jax.random.normal(k_b2, (F_out2,), jnp.float32) * 0.02
    x2 = jax.random.normal(k_x2, (B2, F_in2), jnp.float32)

    ffn2 = make_feedforward(w2, b2, tm_max=256, tn_max=256, tk_max=512)
    out2 = jax.block_until_ready(ffn2(x2))
    ref2 = jnp.maximum(
        jax.lax.dot_general(x2, w2, (((1,), (1,)), ((), ())),
                            precision=jax.lax.Precision.HIGHEST) + b2, 0.0)
    assert out2.shape == (B2, F_out2)
    assert jnp.allclose(out2, ref2, atol=2e-2, rtol=2e-2), "tiled-path mismatch"

    print("KERNEL_OK")
</pallas_src>

<mosaic_0001>
module attributes {stable_mosaic.version = 11 : i64} {
  func.func @_ffn_small_kernel(%arg0: memref<8x4xf32, #tpu.memory_space<vmem>>, %arg1: memref<4x4xf32, #tpu.memory_space<vmem>>, %arg2: memref<1x4xf32, #tpu.memory_space<vmem>>, %arg3: memref<8x4xf32, #tpu.memory_space<vmem>>) attributes {dimension_semantics = [], scalar_prefetch = 0 : i64, scratch_operands = 0 : i64, tpu.core_type = #tpu.core_type<tc>} {
    %c0 = arith.constant 0 : index
    %c0_0 = arith.constant 0 : index
    %0 = vector.load %arg0[%c0, %c0_0] : memref<8x4xf32, #tpu.memory_space<vmem>>, vector<8x4xf32>
    %c0_1 = arith.constant 0 : index
    %c0_2 = arith.constant 0 : index
    %1 = vector.load %arg1[%c0_1, %c0_2] : memref<4x4xf32, #tpu.memory_space<vmem>>, vector<4x4xf32>
    %cst = arith.constant dense<0.000000e+00> : vector<8x4xf32>
    %2 = tpu.matmul %0, %1, %cst {dimension_numbers = #tpu.dot_dimension_numbers<[1], [1], [0], [0], [0, 0, 1, 0], [], []>} : vector<8x4xf32>, vector<4x4xf32>, vector<8x4xf32> -> vector<8x4xf32>
    %c0_3 = arith.constant 0 : index
    %c0_4 = arith.constant 0 : index
    %3 = vector.load %arg2[%c0_3, %c0_4] : memref<1x4xf32, #tpu.memory_space<vmem>>, vector<1x4xf32>
    %4 = vector.broadcast %3 : vector<1x4xf32> to vector<8x4xf32>
    %5 = arith.addf %2, %4 : vector<8x4xf32>
    %cst_5 = arith.constant 0.000000e+00 : f32
    %6 = vector.broadcast %cst_5 : f32 to vector<8x4xf32>
    %7 = arith.maximumf %5, %6 : vector<8x4xf32>
    %c0_6 = arith.constant 0 : index
    %c0_7 = arith.constant 0 : index
    %8 = vector.load %arg3[%c0_6, %c0_7] : memref<8x4xf32, #tpu.memory_space<vmem>>, vector<8x4xf32>
    tpu.vector_store %arg3[%c0_6, %c0_7], %7 {strides = array<i32>} : memref<8x4xf32, #tpu.memory_space<vmem>>, vector<8x4xf32>,
    return
  }
}

</mosaic_0001>

<llo_original>
// kernel: tpu_custom_call.1
$region0: #{tpu_custom_call.1}
  #allocation0 [shape = 'u32[]', space=smem, size = 0x4, offset = 0x4, fixed_abs, tag = 'smem constant byte address 0x4 - core index']
  #allocation1 [shape = 'u32[72,128]{1,0:T(1,128)}', space=vmem, size = 0x9000, scoped, tag = 'internal scratch']
  %s0 = inlined_call_operand.vmem [shape: f32[8,4], index: 0, kind: input, shape index: {}]
  %s1 = inlined_call_operand.vmem [shape: f32[4,4], index: 1, kind: input, shape index: {}]
  %s2 = inlined_call_operand.vmem [shape: f32[1,4], index: 2, kind: input, shape index: {}]
  %s3 = inlined_call_operand.vmem [shape: f32[8,4], index: 3, kind: output, shape index: {}]
  %s4 = sld [smem:[#allocation0]]
  $region22: #{tpu_custom_call.1} parent=0
    _
  %s6 = ssub.s32 1, %s4
  %s7 = scalar_select 0, %s6, %s4
  // Predicated region
  $region2: #{tpu_custom_call.1} parent=0 // pred_check
    _
  $region3: #{tpu_custom_call.1} parent=0 // pred_check_branch
    %9 = sbr.rel (0) target = $region5
  $region4: #{tpu_custom_call.1} parent=0 // pred_region
    _
  $region5: #{tpu_custom_call.1} parent=0 // pred_fallthru
    _
  // Predicated region
  $region6: #{tpu_custom_call.1} parent=0 // pred_check
    _
  $region7: #{tpu_custom_call.1} parent=0 // pred_check_branch
    %11 = sbr.rel (0) target = $region9
  $region8: #{tpu_custom_call.1} parent=0 // pred_region
    _
  $region9: #{tpu_custom_call.1} parent=0 // pred_fallthru
    _
  // Predicated region
  $region10: #{tpu_custom_call.1} parent=0 // pred_check
    _
  $region11: #{tpu_custom_call.1} parent=0 // pred_check_branch
    %13 = sbr.rel (0) target = $region13
  $region12: #{tpu_custom_call.1} parent=0 // pred_region
    _
  $region13: #{tpu_custom_call.1} parent=0 // pred_fallthru
    _
  %v14 = vld [vmem:[%s0] sm:$0xff]
  %v15 = vld [vmem:[%s1] sm:$0xf]
  %v16 = vld [vmem:[%s2] sm:$0x1]
  %v18 = vperm.slane %v16, 0
  %vm20 = vcmask 31744
  %v22 = vsel %vm20, %v14, 0
  %v25 = vsel %vm20, %v15, 0
  %27 = vmatpush.xpose.msra.mxu0 0.0
  %28 = vmatpush.xpose.msra.mxu0 0.0
  %29 = vmatpush.xpose.msra.mxu0 0.0
  %30 = vmatpush.xpose.msra.mxu0 0.0
  %31 = vmatpush.xpose.msra.mxu0 0.0
  %32 = vmatpush.xpose.msra.mxu0 0.0
  %33 = vmatpush.xpose.msra.mxu0 0.0
  %34 = vmatpush.xpose.msra.mxu0 0.0
  %35 = vmatpush.xpose.msra.mxu0 0.0
  %36 = vmatpush.xpose.msra.mxu0 0.0
  %37 = vmatpush.xpose.msra.mxu0 0.0
  %38 = vmatpush.xpose.msra.mxu0 0.0
  %39 = vmatpush.xpose.msra.mxu0 0.0
  %40 = vmatpush.xpose.msra.mxu0 0.0
  %41 = vmatpush.xpose.msra.mxu0 0.0
  %42 = vmatpush.xpose.msra.mxu0 %v25
  %43 = vmatmul.f32.gmra.mxu0 %v22
  %v44 = vpop.f32.mrf.mxu0
  %v45 = vadd.f32 %v18, %v44
  %46 = vdwg.mxu0
  %v47 = vmax.f32 %v45, 0.0
  %48 = vst.msk [vmem:[%s3] sm:$0xff] %vm20, %v47
  // Predicated region
  $region14: #{tpu_custom_call.1} parent=0 // pred_check
    _
  $region15: #{tpu_custom_call.1} parent=0 // pred_check_branch
    %50 = sbr.rel (0) target = $region17
  $region16: #{tpu_custom_call.1} parent=0 // pred_region
    _
  $region17: #{tpu_custom_call.1} parent=0 // pred_fallthru
    _
  // Predicated region
  $region18: #{tpu_custom_call.1} parent=0 // pred_check
    _
  $region19: #{tpu_custom_call.1} parent=0 // pred_check_branch
    %52 = sbr.rel (0) target = $region21
  $region20: #{tpu_custom_call.1} parent=0 // pred_region
    _
  $region21: #{tpu_custom_call.1} parent=0 // pred_fallthru
    _

</llo_original>
